<compile_context>
chip_gen: v7x
topology: tpu7x:2x2x1
jax: 0.10.0
libtpu: 0.0.40
codegen_flags: <defaults>
</compile_context>

<pallas_src>
import functools

import jax
import jax.numpy as jnp
from jax import lax
from jax.experimental import pallas as pl
from jax.experimental.pallas import tpu as pltpu


def _round_up(x, m):
    return (x + m - 1) // m * m


def _ceil_div(a, b):
    return -(-a // b)


def _choose_tile(dim, align, cap, min_tiles=1):
    """Aligned tile <= ~cap that minimizes padding of `dim`; returns (tile, n)."""
    n = max(min_tiles, _ceil_div(dim, cap))
    tile = _round_up(_ceil_div(dim, n), align)
    return tile, n


def _largest_divisor_tile(dim, align, cap):
    """Largest multiple of `align` dividing `dim` (a multiple of align), <= cap."""
    best = align
    t = align
    while t <= min(dim, cap):
        if dim % t == 0:
            best = t
        t += align
    return best


def _maybe_pad2d(a, rows, cols):
    if rows == 0 and cols == 0:
        return a
    return jnp.pad(a, ((0, rows), (0, cols)))


def _weight_block_spec(block_shape, index_map, deep_pipeline):
    """Streamed-weight BlockSpec; 3-deep buffering in the weight-streaming regime."""
    if deep_pipeline and hasattr(pl, "Buffered"):
        try:
            return pl.BlockSpec(block_shape, index_map,
                                pipeline_mode=pl.Buffered(3))
        except TypeError:
            pass
    return pl.BlockSpec(block_shape, index_map)


# ---------------------------------------------------------------------------
# Prologue (bf16 + multiple batch tiles only): W^T = exp(log_weight)^T once,
# in the matmul compute dtype, with large memory-bound tiles.
# ---------------------------------------------------------------------------
def _exp_weight_t_kernel(logw_ref, wt_ref):
    wt_ref[...] = jnp.exp(logw_ref[...].astype(jnp.float32)).T.astype(wt_ref.dtype)


def _exp_weight_transposed(logw_p, compute_dtype):
    Np, Kp = logw_p.shape
    ptn = _largest_divisor_tile(Np, 128, 512)
    ptk = _largest_divisor_tile(Kp, 128, 512)
    in_item = jnp.dtype(logw_p.dtype).itemsize
    out_item = jnp.dtype(compute_dtype).itemsize
    return pl.pallas_call(
        _exp_weight_t_kernel,
        out_shape=jax.ShapeDtypeStruct((Kp, Np), compute_dtype),
        grid_spec=pltpu.PrefetchScalarGridSpec(
            num_scalar_prefetch=0,
            grid=(Np // ptn, Kp // ptk),
            in_specs=[pl.BlockSpec((ptn, ptk), lambda j, k: (j, k))],
            out_specs=pl.BlockSpec((ptk, ptn), lambda j, k: (k, j)),
        ),
        compiler_params=pltpu.CompilerParams(
            dimension_semantics=("parallel", "parallel")),
        cost_estimate=pl.CostEstimate(
            flops=0,
            transcendentals=Np * Kp,
            bytes_accessed=Np * Kp * (in_item + out_item)),
    )(logw_p)


# ---------------------------------------------------------------------------
# Main matmul kernels: (i, j, k) grid, f32 VMEM accumulator, bias-add + cast
# only in the k==last finalize.
# ---------------------------------------------------------------------------
def _fused_kernel(x_ref, logw_ref, b_ref, o_ref, acc_ref, *, precision,
                  compute_dtype):
    k = pl.program_id(2)

    @pl.when(k == 0)
    def _():
        acc_ref[...] = jnp.zeros_like(acc_ref)

    # exp of the streamed log-weight tile: EUP work, hidden under MXU/DMA.
    w = jnp.exp(logw_ref[...].astype(jnp.float32)).astype(compute_dtype)
    acc_ref[...] += lax.dot_general(
        x_ref[...], w,
        dimension_numbers=(((1,), (1,)), ((), ())),   # contract in_features
        preferred_element_type=jnp.float32,
        precision=precision)

    @pl.when(k == pl.num_programs(2) - 1)
    def _():
        o_ref[...] = (acc_ref[...] + b_ref[...].astype(jnp.float32)
                      ).astype(o_ref.dtype)


def _pretransposed_kernel(x_ref, wt_ref, b_ref, o_ref, acc_ref, *, precision):
    k = pl.program_id(2)

    @pl.when(k == 0)
    def _():
        acc_ref[...] = jnp.zeros_like(acc_ref)

    # W already exp'd and transposed to (K, N): plain [M,K] x [K,N] dot.
    acc_ref[...] += jnp.dot(x_ref[...], wt_ref[...],
                            preferred_element_type=jnp.float32,
                            precision=precision)

    @pl.when(k == pl.num_programs(2) - 1)
    def _():
        o_ref[...] = (acc_ref[...] + b_ref[...].astype(jnp.float32)
                      ).astype(o_ref.dtype)


def positive_linear(x, log_weight, bias=None, *, tm_max=512, tn_max=512,
                    tk_max=None, precision=None):
    """Pallas TPU forward of PositiveLinear.

    x:          (B, in_features)
    log_weight: (out_features, in_features)
    bias:       (1, out_features) or None
    """
    B, K = x.shape
    N, K2 = log_weight.shape
    assert K == K2, "in_features mismatch"

    compute_dtype = x.dtype
    out_dtype = x.dtype

    auto_precision = precision is None
    if auto_precision:
        # HIGH (bf16x3) ~ f32-level accuracy at half of HIGHEST's MXU passes.
        precision = (lax.Precision.HIGH if compute_dtype == jnp.float32
                     else lax.Precision.DEFAULT)
    safe_precision = (lax.Precision.HIGHEST if compute_dtype == jnp.float32
                      else lax.Precision.DEFAULT)

    if tk_max is None:
        tk_max = 1024 if K >= 2048 else 512

    # --- adaptive tile selection ------------------------------------------
    tm, n_i = _choose_tile(B, 8, tm_max)
    # Single batch tile: split N over >=2 j-tiles so both v7x TCs get work.
    min_j = 2 if (n_i == 1 and N > 128) else 1
    tn, n_j = _choose_tile(N, 128, tn_max, min_tiles=min_j)
    tk, n_k = _choose_tile(K, 128, tk_max)
    Mp, Np, Kp = tm * n_i, tn * n_j, tk * n_k

    # Zero padding is exact: padded x columns are 0 (kill the exp(0)=1 weight
    # entries); padded output rows/cols are sliced off at the end.
    x_p = _maybe_pad2d(x, Mp - B, Kp - K)
    logw_p = _maybe_pad2d(log_weight, Np - N, Kp - K)
    if bias is None:
        bias_p = jnp.zeros((1, Np), dtype=jnp.float32)
    else:
        bias_p = _maybe_pad2d(bias.astype(jnp.float32), 0, Np - N)

    # Prologue (exp + pre-transpose) only pays off when a sub-f32 weight is
    # re-streamed across several batch tiles.
    use_prologue = (compute_dtype != jnp.float32) and (n_i > 1)
    deep_w_pipeline = (n_i == 1)   # pure weight-streaming regime

    x_item = jnp.dtype(compute_dtype).itemsize
    out_item = jnp.dtype(out_dtype).itemsize
    if use_prologue:
        w_operand = _exp_weight_transposed(logw_p, compute_dtype)
        w_item = x_item
        transcendentals = N * K                 # done once in the prologue
    else:
        w_operand = logw_p
        w_item = jnp.dtype(log_weight.dtype).itemsize
        transcendentals = n_i * Np * Kp         # recomputed per batch tile

    # VMEM budget (worst case: triple-buffered weight) + headroom; explicit so
    # large tiles also fit v5e's 16 MiB default while staying < v7x's 64 MiB.
    vmem_need = (2 * tm * tk * x_item + 3 * tn * tk * w_item
                 + 2 * tn * 4 + 2 * tm * tn * out_item + tm * tn * 4)
    vmem_limit = int(min(48 * 1024 * 1024, max(24 * 1024 * 1024, 2 * vmem_need)))

    grid = (n_i, n_j, n_k)
    cost = pl.CostEstimate(
        flops=2 * Mp * Np * Kp,
        transcendentals=transcendentals,
        bytes_accessed=(n_j * Mp * Kp * x_item + n_i * Np * Kp * w_item
                        + Mp * Np * out_item + Np * 4))

    def _run(prec, deep):
        if use_prologue:
            kernel = functools.partial(_pretransposed_kernel, precision=prec)
            w_spec = _weight_block_spec((tk, tn), lambda i, j, k: (k, j), deep)
        else:
            kernel = functools.partial(_fused_kernel, precision=prec,
                                       compute_dtype=compute_dtype)
            w_spec = _weight_block_spec((tn, tk), lambda i, j, k: (j, k), deep)
        return pl.pallas_call(
            kernel,
            out_shape=jax.ShapeDtypeStruct((Mp, Np), out_dtype),
            grid_spec=pltpu.PrefetchScalarGridSpec(
                num_scalar_prefetch=0,
                grid=grid,
                in_specs=[
                    pl.BlockSpec((tm, tk), lambda i, j, k: (i, k)),   # x
                    w_spec,                                           # weight
                    pl.BlockSpec((1, tn), lambda i, j, k: (0, j)),    # bias
                ],
                out_specs=pl.BlockSpec((tm, tn), lambda i, j, k: (i, j)),
                scratch_shapes=[pltpu.VMEM((tm, tn), jnp.float32)],
            ),
            compiler_params=pltpu.CompilerParams(
                dimension_semantics=("parallel", "parallel", "arbitrary"),
                vmem_limit_bytes=vmem_limit),
            cost_estimate=cost,
        )(x_p, w_operand, bias_p)

    # Optimized config first; fall back once to the conservative, previously
    # validated config (HIGHEST for f32, default double buffering) if the
    # optimized one fails to lower on this jax/libtpu version.
    attempts = [(precision, deep_w_pipeline)]
    fb = (safe_precision if auto_precision else precision, False)
    if fb != attempts[0]:
        attempts.append(fb)
    out_p = None
    last_err = None
    for prec, deep in attempts:
        try:
            out_p = _run(prec, deep)
            break
        except Exception as e:  # lowering fallback only
            last_err = e
    if out_p is None:
        raise last_err

    if Mp == B and Np == N:
        return out_p
    return out_p[:B, :N]


if __name__ == "__main__":
    key = jax.random.PRNGKey(0)
    kx, kw, kb, kx2, kw2, kb2, kx3, kw3, kb3 = jax.random.split(key, 9)

    # 1) Small shape matching the module, f32, with bias (fused-exp path).
    batch, in_features, out_features = 8, 32, 16
    x = jax.random.normal(kx, (batch, in_features), dtype=jnp.float32)
    log_weight = 0.1 * jax.random.normal(
        kw, (out_features, in_features), dtype=jnp.float32)
    bias = jax.random.normal(kb, (1, out_features), dtype=jnp.float32)

    out = jax.block_until_ready(positive_linear(x, log_weight, bias))
    ref = jnp.dot(x, jnp.exp(log_weight).T,
                  precision=lax.Precision.HIGHEST) + bias
    assert out.shape == (batch, out_features)
    assert jnp.allclose(out, ref, atol=1e-4, rtol=1e-4)

    # 2) Ragged, non-tile-aligned f32 case: padding, j-split, finalize path.
    B2, K2, N2 = 300, 384, 200
    x2 = jax.random.normal(kx2, (B2, K2), dtype=jnp.float32)
    lw2 = 0.05 * jax.random.normal(kw2, (N2, K2), dtype=jnp.float32)
    b2 = jax.random.normal(kb2, (1, N2), dtype=jnp.float32)
    out2 = jax.block_until_ready(positive_linear(x2, lw2, b2))
    ref2 = jnp.dot(x2, jnp.exp(lw2).T, precision=lax.Precision.HIGHEST) + b2
    assert out2.shape == (B2, N2)
    assert jnp.allclose(out2, ref2, atol=2e-3, rtol=2e-3)

    # 3) require_bias=False path.
    out3 = jax.block_until_ready(positive_linear(x, log_weight, None))
    ref3 = jnp.dot(x, jnp.exp(log_weight).T, precision=lax.Precision.HIGHEST)
    assert jnp.allclose(out3, ref3, atol=1e-4, rtol=1e-4)

    # 4) bf16 with several batch tiles (exercises the exp+transpose prologue).
    B4, K4, N4 = 260, 256, 256
    x4 = jax.random.normal(kx3, (B4, K4), dtype=jnp.float32).astype(jnp.bfloat16)
    lw4 = (0.05 * jax.random.normal(kw3, (N4, K4), dtype=jnp.float32)
           ).astype(jnp.bfloat16)
    b4 = jax.random.normal(kb3, (1, N4), dtype=jnp.float32).astype(jnp.bfloat16)
    out4 = jax.block_until_ready(positive_linear(x4, lw4, b4, tm_max=128))
    w4 = jnp.exp(lw4.astype(jnp.float32)).astype(jnp.bfloat16).astype(jnp.float32)
    ref4 = jnp.dot(x4.astype(jnp.float32), w4.T,
                   precision=lax.Precision.HIGHEST) + b4.astype(jnp.float32)
    assert out4.shape == (B4, N4)
    assert jnp.allclose(out4.astype(jnp.float32), ref4, atol=0.2, rtol=2e-2)

    print("KERNEL_OK")
</pallas_src>

<mosaic_0001>
module attributes {stable_mosaic.version = 11 : i64} {
  func.func @_fused_kernel(%arg0: i32, %arg1: i32, %arg2: i32, %arg3: memref<8x128xf32, #tpu.memory_space<vmem>>, %arg4: memref<128x128xf32, #tpu.memory_space<vmem>>, %arg5: memref<1x128xf32, #tpu.memory_space<vmem>>, %arg6: memref<8x128xf32, #tpu.memory_space<vmem>>, %arg7: memref<8x128xf32, #tpu.memory_space<vmem>>) attributes {dimension_semantics = [#tpu.dimension_semantics<parallel>, #tpu.dimension_semantics<parallel>, #tpu.dimension_semantics<arbitrary>], iteration_bounds = array<i64: 1, 1, 1>, scalar_prefetch = 0 : i64, scratch_operands = 1 : i64, tpu.core_type = #tpu.core_type<tc>, window_params = [{transform_indices = @transform_0, window_bounds = array<i64: 8, 128>}, {transform_indices = @transform_1, window_bounds = array<i64: 128, 128>}, {transform_indices = @transform_2, window_bounds = array<i64: 1, 128>}, {transform_indices = @transform_3, window_bounds = array<i64: 8, 128>}]} {
    %c0_i32 = arith.constant 0 : i32
    %0 = arith.cmpi eq, %arg2, %c0_i32 : i32
    %1 = arith.extui %0 : i1 to i32
    %c0_i32_0 = arith.constant 0 : i32
    %2 = arith.cmpi ne, %1, %c0_i32_0 : i32
    scf.if %2 {
      %cst_10 = arith.constant 0.000000e+00 : f32
      %13 = vector.broadcast %cst_10 : f32 to vector<8x128xf32>
      %c0_11 = arith.constant 0 : index
      %c0_12 = arith.constant 0 : index
      %14 = vector.load %arg7[%c0_11, %c0_12] : memref<8x128xf32, #tpu.memory_space<vmem>>, vector<8x128xf32>
      tpu.vector_store %arg7[%c0_11, %c0_12], %13 {strides = array<i32>} : memref<8x128xf32, #tpu.memory_space<vmem>>, vector<8x128xf32>,
    } else {
    }
    %c0 = arith.constant 0 : index
    %c0_1 = arith.constant 0 : index
    %3 = vector.load %arg4[%c0, %c0_1] : memref<128x128xf32, #tpu.memory_space<vmem>>, vector<128x128xf32>
    %4 = math.exp %3 : vector<128x128xf32>
    %c0_2 = arith.constant 0 : index
    %c0_3 = arith.constant 0 : index
    %5 = vector.load %arg7[%c0_2, %c0_3] : memref<8x128xf32, #tpu.memory_space<vmem>>, vector<8x128xf32>
    %c0_4 = arith.constant 0 : index
    %c0_5 = arith.constant 0 : index
    %6 = vector.load %arg3[%c0_4, %c0_5] : memref<8x128xf32, #tpu.memory_space<vmem>>, vector<8x128xf32>
    %cst = arith.constant dense<0.000000e+00> : vector<8x128xf32>
    %7 = tpu.matmul %6, %4, %cst {dimension_numbers = #tpu.dot_dimension_numbers<[1], [1], [0], [0], [0, 0, 1, 0], [], []>, precision = #tpu.contract_precision<fp32>} : vector<8x128xf32>, vector<128x128xf32>, vector<8x128xf32> -> vector<8x128xf32>
    %8 = arith.addf %5, %7 : vector<8x128xf32>
    %c0_6 = arith.constant 0 : index
    %c0_7 = arith.constant 0 : index
    %9 = vector.load %arg7[%c0_6, %c0_7] : memref<8x128xf32, #tpu.memory_space<vmem>>, vector<8x128xf32>
    tpu.vector_store %arg7[%c0_6, %c0_7], %8 {strides = array<i32>} : memref<8x128xf32, #tpu.memory_space<vmem>>, vector<8x128xf32>,
    %c0_i32_8 = arith.constant 0 : i32
    %10 = arith.cmpi eq, %arg2, %c0_i32_8 : i32
    %11 = arith.extui %10 : i1 to i32
    %c0_i32_9 = arith.constant 0 : i32
    %12 = arith.cmpi ne, %11, %c0_i32_9 : i32
    scf.if %12 {
      %c0_10 = arith.constant 0 : index
      %c0_11 = arith.constant 0 : index
      %13 = vector.load %arg7[%c0_10, %c0_11] : memref<8x128xf32, #tpu.memory_space<vmem>>, vector<8x128xf32>
      %c0_12 = arith.constant 0 : index
      %c0_13 = arith.constant 0 : index
      %14 = vector.load %arg5[%c0_12, %c0_13] : memref<1x128xf32, #tpu.memory_space<vmem>>, vector<1x128xf32>
      %15 = vector.broadcast %14 : vector<1x128xf32> to vector<8x128xf32>
      %16 = arith.addf %13, %15 : vector<8x128xf32>
      %c0_14 = arith.constant 0 : index
      %c0_15 = arith.constant 0 : index
      %17 = vector.load %arg6[%c0_14, %c0_15] : memref<8x128xf32, #tpu.memory_space<vmem>>, vector<8x128xf32>
      tpu.vector_store %arg6[%c0_14, %c0_15], %16 {strides = array<i32>} : memref<8x128xf32, #tpu.memory_space<vmem>>, vector<8x128xf32>,
    } else {
    }
    return
  }
  func.func @transform_0(%arg0: i32, %arg1: i32, %arg2: i32) -> (i32, i32) {
    %c0_i32 = arith.constant 0 : i32
    return %arg0, %arg2 : i32, i32
  }
  func.func @transform_1(%arg0: i32, %arg1: i32, %arg2: i32) -> (i32, i32) {
    %c0_i32 = arith.constant 0 : i32
    return %arg1, %arg2 : i32, i32
  }
  func.func @transform_2(%arg0: i32, %arg1: i32, %arg2: i32) -> (i32, i32) {
    %c0_i32 = arith.constant 0 : i32
    %c0_i32_0 = arith.constant 0 : i32
    return %c0_i32, %arg1 : i32, i32
  }
  func.func @transform_3(%arg0: i32, %arg1: i32, %arg2: i32) -> (i32, i32) {
    %c0_i32 = arith.constant 0 : i32
    return %arg0, %arg1 : i32, i32
  }
}

</mosaic_0001>

<llo_original>
// kernel: tpu_custom_call.1
$region0: #{tpu_custom_call.1}
  #allocation0 [shape = 'u32[]', space=smem, size = 0x4, offset = 0x4, fixed_abs, tag = 'smem constant byte address 0x4 - core index']
  #allocation1 [shape = 'u32[144,128]{1,0:T(1,128)}', space=vmem, size = 0x12000, scoped, tag = 'internal scratch']
  #allocation2 [shape = 'f32[8,128]{1,0:T(8,128)}', space=vmem, size = 0x1000, scoped, tag = 'scratch operand']
  %s0 = inlined_call_operand.hbm [shape: f32[8,128], index: 0, kind: input, shape index: {}]
  %s1 = inlined_call_operand.hbm [shape: f32[128,128], index: 1, kind: input, shape index: {}]
  %s2 = inlined_call_operand.vmem [shape: f32[1,128], index: 2, kind: input, shape index: {}]
  %s3 = inlined_call_operand.hbm [shape: f32[8,128], index: 3, kind: output, shape index: {}]
  %s4 = sld [smem:[#allocation0]]
  $region38: #{tpu_custom_call.1} parent=0
    _
  %s6 = ssub.s32 1, %s4
  %s7 = scalar_select 0, %s6, %s4
  $region1: #{tpu_custom_call.1} parent=0
    #allocation3 [shape = 'u8[4096]{0}', space=vmem, size = 0x1000, scoped, tag = 'input window, operand 0, single buffered']
    #allocation4 [shape = 's32[1]{0}', space=sflag, size = 0x4, scoped, tag = 'scoped memory for tpu_custom_call.1']
    #allocation5 [shape = 's32[1]{0}', space=sflag, size = 0x4, scoped, tag = 'scoped memory for tpu_custom_call.1']
    #allocation6 [shape = 'u8[65536]{0}', space=vmem, size = 0x10000, scoped, tag = 'input window, operand 1, single buffered']
    #allocation7 [shape = 's32[1]{0}', space=sflag, size = 0x4, scoped, tag = 'scoped memory for tpu_custom_call.1']
    #allocation8 [shape = 'u8[4096]{0}', space=vmem, size = 0x1000, scoped, tag = 'output window, operand 0, single buffered']
    %8 = vsyncpa [#allocation4], 0
    %9 = vsyncpa [#allocation7], 0
    %10 = vsyncpa [#allocation5], 0
    // Predicated region
    $region2: #{tpu_custom_call.1} parent=1 // pred_check
      _
    $region3: #{tpu_custom_call.1} parent=1 // pred_check_branch
      %12 = sbr.rel (0) target = $region5
    $region4: #{tpu_custom_call.1} parent=1 // pred_region
      %s14 = ssub.s32 128, 128
      %15 = vsyncadd [#allocation4], %s14
      %s17 = sshll.u32 [#allocation3], 4
      %s18 = int_to_ptr.vmem [resolvable:$true] %s17
      %20 = dma.hbm_to_vmem [thread:$0]  %s0, 128, %s18, [#allocation4]
    $region5: #{tpu_custom_call.1} parent=1 // pred_fallthru
      _
    // Predicated region
    $region6: #{tpu_custom_call.1} parent=1 // pred_check
      _
    $region7: #{tpu_custom_call.1} parent=1 // pred_check_branch
      %22 = sbr.rel (0) target = $region9
    $region8: #{tpu_custom_call.1} parent=1 // pred_region
      %s24 = ssub.s32 2048, 2048
      %25 = vsyncadd [#allocation7], %s24
      %s26 = sshll.u32 [#allocation6], 4
      %s27 = int_to_ptr.vmem [resolvable:$true] %s26
      %32 = dma.hbm_to_vmem [thread:$0]  %s1, 2048, %s27, [#allocation7], 128, 128, 8
    $region9: #{tpu_custom_call.1} parent=1 // pred_fallthru
      _
    // Predicated region
    $region10: #{tpu_custom_call.1} parent=1 // pred_check
      _
    $region11: #{tpu_custom_call.1} parent=1 // pred_check_branch
      %34 = sbr.rel (0) target = $region13
    $region12: #{tpu_custom_call.1} parent=1 // pred_region
      _
    $region13: #{tpu_custom_call.1} parent=1 // pred_fallthru
      _
    // Predicated region
    $region14: #{tpu_custom_call.1} parent=1 // pred_check
      _
    $region15: #{tpu_custom_call.1} parent=1 // pred_check_branch
      %36 = sbr.rel (0) target = $region17
    $region16: #{tpu_custom_call.1} parent=1 // pred_region
      %37 = dma.done [#allocation4], 128
    $region17: #{tpu_custom_call.1} parent=1 // pred_fallthru
      _
    // Predicated region
    $region18: #{tpu_custom_call.1} parent=1 // pred_check
      _
    $region19: #{tpu_custom_call.1} parent=1 // pred_check_branch
      %39 = sbr.rel (0) target = $region21
    $region20: #{tpu_custom_call.1} parent=1 // pred_region
      %40 = dma.done [#allocation7], 2048
    $region21: #{tpu_custom_call.1} parent=1 // pred_fallthru
      _
    %p41 = scmp.eq.s32.totalorder 0, 0
    // Predicated region
    $region22: #{tpu_custom_call.1} parent=1 // pred_check
      %p42 = pneg %p41
    $region23: #{tpu_custom_call.1} parent=1 // pred_check_branch
      %44 = sbr.rel (%p42) target = $region25
    $region24: #{tpu_custom_call.1} parent=1 // pred_region
      %45 = vst [vmem:[#allocation2] sm:$0xff] 0.0
    $region25: #{tpu_custom_call.1} parent=1 // pred_fallthru
      _
    %v46 = vld [vmem:[#allocation6] sm:$0xff]
    %v47 = vld [vmem:[#allocation6 + $0x8] sm:$0xff]
    %v48 = vld [vmem:[#allocation6 + $0x10] sm:$0xff]
    %v49 = vld [vmem:[#allocation6 + $0x18] sm:$0xff]
    %v50 = vld [vmem:[#allocation6 + $0x20] sm:$0xff]
    %v51 = vld [vmem:[#allocation6 + $0x28] sm:$0xff]
    %v52 = vld [vmem:[#allocation6 + $0x30] sm:$0xff]
    %v53 = vld [vmem:[#allocation6 + $0x38] sm:$0xff]
    %v54 = vld [vmem:[#allocation6 + $0x40] sm:$0xff]
    %v55 = vld [vmem:[#allocation6 + $0x48] sm:$0xff]
    %v56 = vld [vmem:[#allocation6 + $0x50] sm:$0xff]
    %v57 = vld [vmem:[#allocation6 + $0x58] sm:$0xff]
    %v58 = vld [vmem:[#allocation6 + $0x60] sm:$0xff]
    %v59 = vld [vmem:[#allocation6 + $0x68] sm:$0xff]
    %v60 = vld [vmem:[#allocation6 + $0x70] sm:$0xff]
    %v61 = vld [vmem:[#allocation6 + $0x78] sm:$0xff]
    %v62 = vmul.f32 %v46, 1.442695
    %v63 = vpow.pop %v62
    %v64 = vmul.f32 %v47, 1.442695
    %v65 = vpow.pop %v64
    %v66 = vmul.f32 %v48, 1.442695
    %v67 = vpow.pop %v66
    %v68 = vmul.f32 %v49, 1.442695
    %v69 = vpow.pop %v68
    %v70 = vmul.f32 %v50, 1.442695
    %v71 = vpow.pop %v70
    %v72 = vmul.f32 %v51, 1.442695
    %v73 = vpow.pop %v72
    %v74 = vmul.f32 %v52, 1.442695
    %v75 = vpow.pop %v74
    %v76 = vmul.f32 %v53, 1.442695
    %v77 = vpow.pop %v76
    %v78 = vmul.f32 %v54, 1.442695
    %v79 = vpow.pop %v78
    %v80 = vmul.f32 %v55, 1.442695
    %v81 = vpow.pop %v80
    %v82 = vmul.f32 %v56, 1.442695
    %v83 = vpow.pop %v82
    %v84 = vmul.f32 %v57, 1.442695
    %v85 = vpow.pop %v84
    %v86 = vmul.f32 %v58, 1.442695
    %v87 = vpow.pop %v86
    %v88 = vmul.f32 %v59, 1.442695
    %v89 = vpow.pop %v88
    %v90 = vmul.f32 %v60, 1.442695
    %v91 = vpow.pop %v90
    %v92 = vmul.f32 %v61, 1.442695
    %v93 = vpow.pop %v92
    %v94 = vld [vmem:[#allocation2] sm:$0xff]
    %v95 = vld [vmem:[#allocation3] sm:$0xff]
    %96 = vmatprep.subr.mxu0 0.0
    %v97 = vand.u32 %v63, 4294901760
    %98 = vmatpush1.xpose.msra.mxu0 %v97
    %99 = vmatprep.subr.mxu0 0.0
    %v100 = vand.u32 %v65, 4294901760
    %101 = vmatpush1.xpose.msra.mxu0 %v100
    %102 = vmatprep.subr.mxu0 0.0
    %v103 = vand.u32 %v67, 4294901760
    %104 = vmatpush1.xpose.msra.mxu0 %v103
    %105 = vmatprep.subr.mxu0 0.0
    %v106 = vand.u32 %v69, 4294901760
    %107 = vmatpush1.xpose.msra.mxu0 %v106
    %108 = vmatprep.subr.mxu0 0.0
    %v109 = vand.u32 %v71, 4294901760
    %110 = vmatpush1.xpose.msra.mxu0 %v109
    %111 = vmatprep.subr.mxu0 0.0
    %v112 = vand.u32 %v73, 4294901760
    %113 = vmatpush1.xpose.msra.mxu0 %v112
    %114 = vmatprep.subr.mxu0 0.0
    %v115 = vand.u32 %v75, 4294901760
    %116 = vmatpush1.xpose.msra.mxu0 %v115
    %117 = vmatprep.subr.mxu0 0.0
    %v118 = vand.u32 %v77, 4294901760
    %119 = vmatpush1.xpose.msra.mxu0 %v118
    %120 = vmatprep.subr.mxu0 0.0
    %v121 = vand.u32 %v79, 4294901760
    %122 = vmatpush1.xpose.msra.mxu0 %v121
    %123 = vmatprep.subr.mxu0 0.0
    %v124 = vand.u32 %v81, 4294901760
    %125 = vmatpush1.xpose.msra.mxu0 %v124
    %126 = vmatprep.subr.mxu0 0.0
    %v127 = vand.u32 %v83, 4294901760
    %128 = vmatpush1.xpose.msra.mxu0 %v127
    %129 = vmatprep.subr.mxu0 0.0
    %v130 = vand.u32 %v85, 4294901760
    %131 = vmatpush1.xpose.msra.mxu0 %v130
    %132 = vmatprep.subr.mxu0 0.0
    %v133 = vand.u32 %v87, 4294901760
    %134 = vmatpush1.xpose.msra.mxu0 %v133
    %135 = vmatprep.subr.mxu0 0.0
    %v136 = vand.u32 %v89, 4294901760
    %137 = vmatpush1.xpose.msra.mxu0 %v136
    %138 = vmatprep.subr.mxu0 0.0
    %v139 = vand.u32 %v91, 4294901760
    %140 = vmatpush1.xpose.msra.mxu0 %v139
    %141 = vmatprep.subr.mxu0 0.0
    %v142 = vand.u32 %v93, 4294901760
    %143 = vmatpush1.xpose.msra.mxu0 %v142
    %144 = vmatprep.subr.mxu0 0.0
    %145 = vmatpush1.xpose.msra.mxu0 0.0
    %146 = vmatprep.subr.mxu0 0.0
    %147 = vmatpush1.xpose.msra.mxu0 0.0
    %148 = vmatprep.subr.mxu0 0.0
    %149 = vmatpush1.xpose.msra.mxu0 0.0
    %150 = vmatprep.subr.mxu0 0.0
    %151 = vmatpush1.xpose.msra.mxu0 0.0
    %152 = vmatprep.subr.mxu0 0.0
    %153 = vmatpush1.xpose.msra.mxu0 0.0
    %154 = vmatprep.subr.mxu0 0.0
    %155 = vmatpush1.xpose.msra.mxu0 0.0
    %156 = vmatprep.subr.mxu0 0.0
    %157 = vmatpush1.xpose.msra.mxu0 0.0
    %158 = vmatprep.subr.mxu0 0.0
    %159 = vmatpush1.xpose.msra.mxu0 0.0
    %160 = vmatprep.subr.mxu0 0.0
    %161 = vmatpush1.xpose.msra.mxu0 0.0
    %162 = vmatprep.subr.mxu0 0.0
    %163 = vmatpush1.xpose.msra.mxu0 0.0
    %164 = vmatprep.subr.mxu0 0.0
    %165 = vmatpush1.xpose.msra.mxu0 0.0
    %166 = vmatprep.subr.mxu0 0.0
    %167 = vmatpush1.xpose.msra.mxu0 0.0
    %168 = vmatprep.subr.mxu0 0.0
    %169 = vmatpush1.xpose.msra.mxu0 0.0
    %170 = vmatprep.subr.mxu0 0.0
    %171 = vmatpush1.xpose.msra.mxu0 0.0
    %172 = vmatprep.subr.mxu0 0.0
    %173 = vmatpush1.xpose.msra.mxu0 0.0
    %174 = vmatprep.subr.mxu0 0.0
    %175 = vmatpush1.xpose.msra.mxu0 0.0
    %176 = vmatprep.mubr.f32.mxu0 0.0
    %v177 = vand.u32 %v95, 4294901760
    %v178 = vsub.f32 %v95, %v177
    %v179 = vand.u32 %v178, 4294901760
    %v180 = vsub.f32 %v178, %v179
    %v181 = vand.u32 %v180, 4294901760
    %182 = vmatmul.mubr.f32.gmra.mrb[0].mxu0 %v181
    %v183 = vpop.f32.mrb[0].mxu0
    %v184 = vadd.f32 0.0, %v183
    %v185 = vpop.f32.mrb[0].mxu0
    %186 = vdwg.mxu0
    %187 = vmatprep.subr.mxu0 0.0
    %v188 = vand.u32 %v63, 4294901760
    %v189 = vsub.f32 %v63, %v188
    %v190 = vand.u32 %v189, 4294901760
    %v191 = vsub.f32 %v189, %v190
    %v192 = vand.u32 %v191, 4294901760
    %193 = vmatpush1.xpose.msra.mxu0 %v192
    %194 = vmatprep.subr.mxu0 0.0
    %v195 = vand.u32 %v65, 4294901760
    %v196 = vsub.f32 %v65, %v195
    %v197 = vand.u32 %v196, 4294901760
    %v198 = vsub.f32 %v196, %v197
    %v199 = vand.u32 %v198, 4294901760
    %200 = vmatpush1.xpose.msra.mxu0 %v199
    %201 = vmatprep.subr.mxu0 0.0
    %v202 = vand.u32 %v67, 4294901760
    %v203 = vsub.f32 %v67, %v202
    %v204 = vand.u32 %v203, 4294901760
    %v205 = vsub.f32 %v203, %v204
    %v206 = vand.u32 %v205, 4294901760
    %207 = vmatpush1.xpose.msra.mxu0 %v206
    %208 = vmatprep.subr.mxu0 0.0
    %v209 = vand.u32 %v69, 4294901760
    %v210 = vsub.f32 %v69, %v209
    %v211 = vand.u32 %v210, 4294901760
    %v212 = vsub.f32 %v210, %v211
    %v213 = vand.u32 %v212, 4294901760
    %214 = vmatpush1.xpose.msra.mxu0 %v213
    %215 = vmatprep.subr.mxu0 0.0
    %v216 = vand.u32 %v71, 4294901760
    %v217 = vsub.f32 %v71, %v216
    %v218 = vand.u32 %v217, 4294901760
    %v219 = vsub.f32 %v217, %v218
    %v220 = vand.u32 %v219, 4294901760
    %221 = vmatpush1.xpose.msra.mxu0 %v220
    %222 = vmatprep.subr.mxu0 0.0
    %v223 = vand.u32 %v73, 4294901760
    %v224 = vsub.f32 %v73, %v223
    %v225 = vand.u32 %v224, 4294901760
    %v226 = vsub.f32 %v224, %v225
    %v227 = vand.u32 %v226, 4294901760
    %228 = vmatpush1.xpose.msra.mxu0 %v227
    %229 = vmatprep.subr.mxu0 0.0
    %v230 = vand.u32 %v75, 4294901760
    %v231 = vsub.f32 %v75, %v230
    %v232 = vand.u32 %v231, 4294901760
    %v233 = vsub.f32 %v231, %v232
    %v234 = vand.u32 %v233, 4294901760
    %235 = vmatpush1.xpose.msra.mxu0 %v234
    %236 = vmatprep.subr.mxu0 0.0
    %v237 = vand.u32 %v77, 4294901760
    %v238 = vsub.f32 %v77, %v237
    %v239 = vand.u32 %v238, 4294901760
    %v240 = vsub.f32 %v238, %v239
    %v241 = vand.u32 %v240, 4294901760
    %242 = vmatpush1.xpose.msra.mxu0 %v241
    %243 = vmatprep.subr.mxu0 0.0
    %v244 = vand.u32 %v79, 4294901760
    %v245 = vsub.f32 %v79, %v244
    %v246 = vand.u32 %v245, 4294901760
    %v247 = vsub.f32 %v245, %v246
    %v248 = vand.u32 %v247, 4294901760
    %249 = vmatpush1.xpose.msra.mxu0 %v248
    %250 = vmatprep.subr.mxu0 0.0
    %v251 = vand.u32 %v81, 4294901760
    %v252 = vsub.f32 %v81, %v251
    %v253 = vand.u32 %v252, 4294901760
    %v254 = vsub.f32 %v252, %v253
    %v255 = vand.u32 %v254, 4294901760
    %256 = vmatpush1.xpose.msra.mxu0 %v255
    %257 = vmatprep.subr.mxu0 0.0
    %v258 = vand.u32 %v83, 4294901760
    %v259 = vsub.f32 %v83, %v258
    %v260 = vand.u32 %v259, 4294901760
    %v261 = vsub.f32 %v259, %v260
    %v262 = vand.u32 %v261, 4294901760
    %263 = vmatpush1.xpose.msra.mxu0 %v262
    %264 = vmatprep.subr.mxu0 0.0
    %v265 = vand.u32 %v85, 4294901760
    %v266 = vsub.f32 %v85, %v265
    %v267 = vand.u32 %v266, 4294901760
    %v268 = vsub.f32 %v266, %v267
    %v269 = vand.u32 %v268, 4294901760
    %270 = vmatpush1.xpose.msra.mxu0 %v269
    %271 = vmatprep.subr.mxu0 0.0
    %v272 = vand.u32 %v87, 4294901760
    %v273 = vsub.f32 %v87, %v272
    %v274 = vand.u32 %v273, 4294901760
    %v275 = vsub.f32 %v273, %v274
    %v276 = vand.u32 %v275, 4294901760
    %277 = vmatpush1.xpose.msra.mxu0 %v276
    %278 = vmatprep.subr.mxu0 0.0
    %v279 = vand.u32 %v89, 4294901760
    %v280 = vsub.f32 %v89, %v279
    %v281 = vand.u32 %v280, 4294901760
    %v282 = vsub.f32 %v280, %v281
    %v283 = vand.u32 %v282, 4294901760
    %284 = vmatpush1.xpose.msra.mxu0 %v283
    %285 = vmatprep.subr.mxu0 0.0
    %v286 = vand.u32 %v91, 4294901760
    %v287 = vsub.f32 %v91, %v286
    %v288 = vand.u32 %v287, 4294901760
    %v289 = vsub.f32 %v287, %v288
    %v290 = vand.u32 %v289, 4294901760
    %291 = vmatpush1.xpose.msra.mxu0 %v290
    %292 = vmatprep.subr.mxu0 0.0
    %v293 = vand.u32 %v93, 4294901760
    %v294 = vsub.f32 %v93, %v293
    %v295 = vand.u32 %v294, 4294901760
    %v296 = vsub.f32 %v294, %v295
    %v297 = vand.u32 %v296, 4294901760
    %298 = vmatpush1.xpose.msra.mxu0 %v297
    %299 = vmatprep.subr.mxu0 0.0
    %300 = vmatpush1.xpose.msra.mxu0 0.0
    %301 = vmatprep.subr.mxu0 0.0
    %302 = vmatpush1.xpose.msra.mxu0 0.0
    %303 = vmatprep.subr.mxu0 0.0
    %304 = vmatpush1.xpose.msra.mxu0 0.0
    %305 = vmatprep.subr.mxu0 0.0
    %306 = vmatpush1.xpose.msra.mxu0 0.0
    %307 = vmatprep.subr.mxu0 0.0
    %308 = vmatpush1.xpose.msra.mxu0 0.0
    %309 = vmatprep.subr.mxu0 0.0
    %310 = vmatpush1.xpose.msra.mxu0 0.0
    %311 = vmatprep.subr.mxu0 0.0
    %312 = vmatpush1.xpose.msra.mxu0 0.0
    %313 = vmatprep.subr.mxu0 0.0
    %314 = vmatpush1.xpose.msra.mxu0 0.0
    %315 = vmatprep.subr.mxu0 0.0
    %316 = vmatpush1.xpose.msra.mxu0 0.0
    %317 = vmatprep.subr.mxu0 0.0
    %318 = vmatpush1.xpose.msra.mxu0 0.0
    %319 = vmatprep.subr.mxu0 0.0
    %320 = vmatpush1.xpose.msra.mxu0 0.0
    %321 = vmatprep.subr.mxu0 0.0
    %322 = vmatpush1.xpose.msra.mxu0 0.0
    %323 = vmatprep.subr.mxu0 0.0
    %324 = vmatpush1.xpose.msra.mxu0 0.0
    %325 = vmatprep.subr.mxu0 0.0
    %326 = vmatpush1.xpose.msra.mxu0 0.0
    %327 = vmatprep.subr.mxu0 0.0
    %328 = vmatpush1.xpose.msra.mxu0 0.0
    %329 = vmatprep.subr.mxu0 0.0
    %330 = vmatpush1.xpose.msra.mxu0 0.0
    %331 = vmatprep.mubr.f32.mxu0 0.0
    %v332 = vand.u32 %v95, 4294901760
    %333 = vmatmul.mubr.f32.gmra.mrb[0].mxu0 %v332
    %v334 = vpop.f32.mrb[0].mxu0
    %v335 = vadd.f32 %v184, %v334
    %v336 = vpop.f32.mrb[0].mxu0
    %337 = vdwg.mxu0
    %338 = vmatprep.subr.mxu0 0.0
    %v339 = vand.u32 %v63, 4294901760
    %v340 = vsub.f32 %v63, %v339
    %341 = vmatpush1.xpose.msra.mxu0 %v340
    %342 = vmatprep.subr.mxu0 0.0
    %v343 = vand.u32 %v65, 4294901760
    %v344 = vsub.f32 %v65, %v343
    %345 = vmatpush1.xpose.msra.mxu0 %v344
    %346 = vmatprep.subr.mxu0 0.0
    %v347 = vand.u32 %v67, 4294901760
    %v348 = vsub.f32 %v67, %v347
    %349 = vmatpush1.xpose.msra.mxu0 %v348
    %350 = vmatprep.subr.mxu0 0.0
    %v351 = vand.u32 %v69, 4294901760
    %v352 = vsub.f32 %v69, %v351
    %353 = vmatpush1.xpose.msra.mxu0 %v352
    %354 = vmatprep.subr.mxu0 0.0
    %v355 = vand.u32 %v71, 4294901760
    %v356 = vsub.f32 %v71, %v355
    %357 = vmatpush1.xpose.msra.mxu0 %v356
    %358 = vmatprep.subr.mxu0 0.0
    %v359 = vand.u32 %v73, 4294901760
    %v360 = vsub.f32 %v73, %v359
    %361 = vmatpush1.xpose.msra.mxu0 %v360
    %362 = vmatprep.subr.mxu0 0.0
    %v363 = vand.u32 %v75, 4294901760
    %v364 = vsub.f32 %v75, %v363
    %365 = vmatpush1.xpose.msra.mxu0 %v364
    %366 = vmatprep.subr.mxu0 0.0
    %v367 = vand.u32 %v77, 4294901760
    %v368 = vsub.f32 %v77, %v367
    %369 = vmatpush1.xpose.msra.mxu0 %v368
    %370 = vmatprep.subr.mxu0 0.0
    %v371 = vand.u32 %v79, 4294901760
    %v372 = vsub.f32 %v79, %v371
    %373 = vmatpush1.xpose.msra.mxu0 %v372
    %374 = vmatprep.subr.mxu0 0.0
    %v375 = vand.u32 %v81, 4294901760
    %v376 = vsub.f32 %v81, %v375
    %377 = vmatpush1.xpose.msra.mxu0 %v376
    %378 = vmatprep.subr.mxu0 0.0
    %v379 = vand.u32 %v83, 4294901760
    %v380 = vsub.f32 %v83, %v379
    %381 = vmatpush1.xpose.msra.mxu0 %v380
    %382 = vmatprep.subr.mxu0 0.0
    %v383 = vand.u32 %v85, 4294901760
    %v384 = vsub.f32 %v85, %v383
    %385 = vmatpush1.xpose.msra.mxu0 %v384
    %386 = vmatprep.subr.mxu0 0.0
    %v387 = vand.u32 %v87, 4294901760
    %v388 = vsub.f32 %v87, %v387
    %389 = vmatpush1.xpose.msra.mxu0 %v388
    %390 = vmatprep.subr.mxu0 0.0
    %v391 = vand.u32 %v89, 4294901760
    %v392 = vsub.f32 %v89, %v391
    %393 = vmatpush1.xpose.msra.mxu0 %v392
    %394 = vmatprep.subr.mxu0 0.0
    %v395 = vand.u32 %v91, 4294901760
    %v396 = vsub.f32 %v91, %v395
    %397 = vmatpush1.xpose.msra.mxu0 %v396
    %398 = vmatprep.subr.mxu0 0.0
    %v399 = vand.u32 %v93, 4294901760
    %v400 = vsub.f32 %v93, %v399
    %401 = vmatpush1.xpose.msra.mxu0 %v400
    %402 = vmatprep.subr.mxu0 0.0
    %403 = vmatpush1.xpose.msra.mxu0 0.0
    %404 = vmatprep.subr.mxu0 0.0
    %405 = vmatpush1.xpose.msra.mxu0 0.0
    %406 = vmatprep.subr.mxu0 0.0
    %407 = vmatpush1.xpose.msra.mxu0 0.0
    %408 = vmatprep.subr.mxu0 0.0
    %409 = vmatpush1.xpose.msra.mxu0 0.0
    %410 = vmatprep.subr.mxu0 0.0
    %411 = vmatpush1.xpose.msra.mxu0 0.0
    %412 = vmatprep.subr.mxu0 0.0
    %413 = vmatpush1.xpose.msra.mxu0 0.0
    %414 = vmatprep.subr.mxu0 0.0
    %415 = vmatpush1.xpose.msra.mxu0 0.0
    %416 = vmatprep.subr.mxu0 0.0
    %417 = vmatpush1.xpose.msra.mxu0 0.0
    %418 = vmatprep.subr.mxu0 0.0
    %419 = vmatpush1.xpose.msra.mxu0 0.0
    %420 = vmatprep.subr.mxu0 0.0
    %421 = vmatpush1.xpose.msra.mxu0 0.0
    %422 = vmatprep.subr.mxu0 0.0
    %423 = vmatpush1.xpose.msra.mxu0 0.0
    %424 = vmatprep.subr.mxu0 0.0
    %425 = vmatpush1.xpose.msra.mxu0 0.0
    %426 = vmatprep.subr.mxu0 0.0
    %427 = vmatpush1.xpose.msra.mxu0 0.0
    %428 = vmatprep.subr.mxu0 0.0
    %429 = vmatpush1.xpose.msra.mxu0 0.0
    %430 = vmatprep.subr.mxu0 0.0
    %431 = vmatpush1.xpose.msra.mxu0 0.0
    %432 = vmatprep.subr.mxu0 0.0
    %433 = vmatpush1.xpose.msra.mxu0 0.0
    %434 = vmatprep.mubr.f32.mxu0 0.0
    %v435 = vand.u32 %v95, 4294901760
    %v436 = vsub.f32 %v95, %v435
    %437 = vmatmul.mubr.f32.gmra.mrb[0].mxu0 %v436
    %v438 = vpop.f32.mrb[0].mxu0
    %v439 = vadd.f32 %v335, %v438
    %v440 = vpop.f32.mrb[0].mxu0
    %441 = vdwg.mxu0
    %442 = vmatprep.subr.mxu0 0.0
    %v443 = vand.u32 %v63, 4294901760
    %444 = vmatpush1.xpose.msra.mxu0 %v443
    %445 = vmatprep.subr.mxu0 0.0
    %v446 = vand.u32 %v65, 4294901760
    %447 = vmatpush1.xpose.msra.mxu0 %v446
    %448 = vmatprep.subr.mxu0 0.0
    %v449 = vand.u32 %v67, 4294901760
    %450 = vmatpush1.xpose.msra.mxu0 %v449
    %451 = vmatprep.subr.mxu0 0.0
    %v452 = vand.u32 %v69, 4294901760
    %453 = vmatpush1.xpose.msra.mxu0 %v452
    %454 = vmatprep.subr.mxu0 0.0
    %v455 = vand.u32 %v71, 4294901760
    %456 = vmatpush1.xpose.msra.mxu0 %v455
    %457 = vmatprep.subr.mxu0 0.0
    %v458 = vand.u32 %v73, 4294901760
    %459 = vmatpush1.xpose.msra.mxu0 %v458
    %460 = vmatprep.subr.mxu0 0.0
    %v461 = vand.u32 %v75, 4294901760
    %462 = vmatpush1.xpose.msra.mxu0 %v461
    %463 = vmatprep.subr.mxu0 0.0
    %v464 = vand.u32 %v77, 4294901760
    %465 = vmatpush1.xpose.msra.mxu0 %v464
    %466 = vmatprep.subr.mxu0 0.0
    %v467 = vand.u32 %v79, 4294901760
    %468 = vmatpush1.xpose.msra.mxu0 %v467
    %469 = vmatprep.subr.mxu0 0.0
    %v470 = vand.u32 %v81, 4294901760
    %471 = vmatpush1.xpose.msra.mxu0 %v470
    %472 = vmatprep.subr.mxu0 0.0
    %v473 = vand.u32 %v83, 4294901760
    %474 = vmatpush1.xpose.msra.mxu0 %v473
    %475 = vmatprep.subr.mxu0 0.0
    %v476 = vand.u32 %v85, 4294901760
    %477 = vmatpush1.xpose.msra.mxu0 %v476
    %478 = vmatprep.subr.mxu0 0.0
    %v479 = vand.u32 %v87, 4294901760
    %480 = vmatpush1.xpose.msra.mxu0 %v479
    %481 = vmatprep.subr.mxu0 0.0
    %v482 = vand.u32 %v89, 4294901760
    %483 = vmatpush1.xpose.msra.mxu0 %v482
    %484 = vmatprep.subr.mxu0 0.0
    %v485 = vand.u32 %v91, 4294901760
    %486 = vmatpush1.xpose.msra.mxu0 %v485
    %487 = vmatprep.subr.mxu0 0.0
    %v488 = vand.u32 %v93, 4294901760
    %489 = vmatpush1.xpose.msra.mxu0 %v488
    %490 = vmatprep.subr.mxu0 0.0
    %491 = vmatpush1.xpose.msra.mxu0 0.0
    %492 = vmatprep.subr.mxu0 0.0
    %493 = vmatpush1.xpose.msra.mxu0 0.0
    %494 = vmatprep.subr.mxu0 0.0
    %495 = vmatpush1.xpose.msra.mxu0 0.0
    %496 = vmatprep.subr.mxu0 0.0
    %497 = vmatpush1.xpose.msra.mxu0 0.0
    %498 = vmatprep.subr.mxu0 0.0
    %499 = vmatpush1.xpose.msra.mxu0 0.0
    %500 = vmatprep.subr.mxu0 0.0
    %501 = vmatpush1.xpose.msra.mxu0 0.0
    %502 = vmatprep.subr.mxu0 0.0
    %503 = vmatpush1.xpose.msra.mxu0 0.0
    %504 = vmatprep.subr.mxu0 0.0
    %505 = vmatpush1.xpose.msra.mxu0 0.0
    %506 = vmatprep.subr.mxu0 0.0
    %507 = vmatpush1.xpose.msra.mxu0 0.0
    %508 = vmatprep.subr.mxu0 0.0
    %509 = vmatpush1.xpose.msra.mxu0 0.0
    %510 = vmatprep.subr.mxu0 0.0
    %511 = vmatpush1.xpose.msra.mxu0 0.0
    %512 = vmatprep.subr.mxu0 0.0
    %513 = vmatpush1.xpose.msra.mxu0 0.0
    %514 = vmatprep.subr.mxu0 0.0
    %515 = vmatpush1.xpose.msra.mxu0 0.0
    %516 = vmatprep.subr.mxu0 0.0
    %517 = vmatpush1.xpose.msra.mxu0 0.0
    %518 = vmatprep.subr.mxu0 0.0
    %519 = vmatpush1.xpose.msra.mxu0 0.0
    %520 = vmatprep.subr.mxu0 0.0
    %521 = vmatpush1.xpose.msra.mxu0 0.0
    %522 = vmatprep.mubr.f32.mxu0 0.0
    %v523 = vand.u32 %v95, 4294901760
    %v524 = vsub.f32 %v95, %v523
    %v525 = vand.u32 %v524, 4294901760
    %526 = vmatmul.mubr.f32.gmra.mrb[0].mxu0 %v525
    %v527 = vpop.f32.mrb[0].mxu0
    %v528 = vadd.f32 %v439, %v527
    %v529 = vpop.f32.mrb[0].mxu0
    %530 = vdwg.mxu0
    %531 = vmatprep.subr.mxu0 0.0
    %v532 = vand.u32 %v63, 4294901760
    %v533 = vsub.f32 %v63, %v532
    %v534 = vand.u32 %v533, 4294901760
    %535 = vmatpush1.xpose.msra.mxu0 %v534
    %536 = vmatprep.subr.mxu0 0.0
    %v537 = vand.u32 %v65, 4294901760
    %v538 = vsub.f32 %v65, %v537
    %v539 = vand.u32 %v538, 4294901760
    %540 = vmatpush1.xpose.msra.mxu0 %v539
    %541 = vmatprep.subr.mxu0 0.0
    %v542 = vand.u32 %v67, 4294901760
    %v543 = vsub.f32 %v67, %v542
    %v544 = vand.u32 %v543, 4294901760
    %545 = vmatpush1.xpose.msra.mxu0 %v544
    %546 = vmatprep.subr.mxu0 0.0
    %v547 = vand.u32 %v69, 4294901760
    %v548 = vsub.f32 %v69, %v547
    %v549 = vand.u32 %v548, 4294901760
    %550 = vmatpush1.xpose.msra.mxu0 %v549
    %551 = vmatprep.subr.mxu0 0.0
    %v552 = vand.u32 %v71, 4294901760
    %v553 = vsub.f32 %v71, %v552
    %v554 = vand.u32 %v553, 4294901760
    %555 = vmatpush1.xpose.msra.mxu0 %v554
    %556 = vmatprep.subr.mxu0 0.0
    %v557 = vand.u32 %v73, 4294901760
    %v558 = vsub.f32 %v73, %v557
    %v559 = vand.u32 %v558, 4294901760
    %560 = vmatpush1.xpose.msra.mxu0 %v559
    %561 = vmatprep.subr.mxu0 0.0
    %v562 = vand.u32 %v75, 4294901760
    %v563 = vsub.f32 %v75, %v562
    %v564 = vand.u32 %v563, 4294901760
    %565 = vmatpush1.xpose.msra.mxu0 %v564
    %566 = vmatprep.subr.mxu0 0.0
    %v567 = vand.u32 %v77, 4294901760
    %v568 = vsub.f32 %v77, %v567
    %v569 = vand.u32 %v568, 4294901760
    %570 = vmatpush1.xpose.msra.mxu0 %v569
    %571 = vmatprep.subr.mxu0 0.0
    %v572 = vand.u32 %v79, 4294901760
    %v573 = vsub.f32 %v79, %v572
    %v574 = vand.u32 %v573, 4294901760
    %575 = vmatpush1.xpose.msra.mxu0 %v574
    %576 = vmatprep.subr.mxu0 0.0
    %v577 = vand.u32 %v81, 4294901760
    %v578 = vsub.f32 %v81, %v577
    %v579 = vand.u32 %v578, 4294901760
    %580 = vmatpush1.xpose.msra.mxu0 %v579
    %581 = vmatprep.subr.mxu0 0.0
    %v582 = vand.u32 %v83, 4294901760
    %v583 = vsub.f32 %v83, %v582
    %v584 = vand.u32 %v583, 4294901760
    %585 = vmatpush1.xpose.msra.mxu0 %v584
    %586 = vmatprep.subr.mxu0 0.0
    %v587 = vand.u32 %v85, 4294901760
    %v588 = vsub.f32 %v85, %v587
    %v589 = vand.u32 %v588, 4294901760
    %590 = vmatpush1.xpose.msra.mxu0 %v589
    %591 = vmatprep.subr.mxu0 0.0
    %v592 = vand.u32 %v87, 4294901760
    %v593 = vsub.f32 %v87, %v592
    %v594 = vand.u32 %v593, 4294901760
    %595 = vmatpush1.xpose.msra.mxu0 %v594
    %596 = vmatprep.subr.mxu0 0.0
    %v597 = vand.u32 %v89, 4294901760
    %v598 = vsub.f32 %v89, %v597
    %v599 = vand.u32 %v598, 4294901760
    %600 = vmatpush1.xpose.msra.mxu0 %v599
    %601 = vmatprep.subr.mxu0 0.0
    %v602 = vand.u32 %v91, 4294901760
    %v603 = vsub.f32 %v91, %v602
    %v604 = vand.u32 %v603, 4294901760
    %605 = vmatpush1.xpose.msra.mxu0 %v604
    %606 = vmatprep.subr.mxu0 0.0
    %v607 = vand.u32 %v93, 4294901760
    %v608 = vsub.f32 %v93, %v607
    %v609 = vand.u32 %v608, 4294901760
    %610 = vmatpush1.xpose.msra.mxu0 %v609
    %611 = vmatprep.subr.mxu0 0.0
    %612 = vmatpush1.xpose.msra.mxu0 0.0
    %613 = vmatprep.subr.mxu0 0.0
    %614 = vmatpush1.xpose.msra.mxu0 0.0
    %615 = vmatprep.subr.mxu0 0.0
    %616 = vmatpush1.xpose.msra.mxu0 0.0
    %617 = vmatprep.subr.mxu0 0.0
    %618 = vmatpush1.xpose.msra.mxu0 0.0
    %619 = vmatprep.subr.mxu0 0.0
    %620 = vmatpush1.xpose.msra.mxu0 0.0
    %621 = vmatprep.subr.mxu0 0.0
    %622 = vmatpush1.xpose.msra.mxu0 0.0
    %623 = vmatprep.subr.mxu0 0.0
    %624 = vmatpush1.xpose.msra.mxu0 0.0
    %625 = vmatprep.subr.mxu0 0.0
    %626 = vmatpush1.xpose.msra.mxu0 0.0
    %627 = vmatprep.subr.mxu0 0.0
    %628 = vmatpush1.xpose.msra.mxu0 0.0
    %629 = vmatprep.subr.mxu0 0.0
    %630 = vmatpush1.xpose.msra.mxu0 0.0
    %631 = vmatprep.subr.mxu0 0.0
    %632 = vmatpush1.xpose.msra.mxu0 0.0
    %633 = vmatprep.subr.mxu0 0.0
    %634 = vmatpush1.xpose.msra.mxu0 0.0
    %635 = vmatprep.subr.mxu0 0.0
    %636 = vmatpush1.xpose.msra.mxu0 0.0
    %637 = vmatprep.subr.mxu0 0.0
    %638 = vmatpush1.xpose.msra.mxu0 0.0
    %639 = vmatprep.subr.mxu0 0.0
    %640 = vmatpush1.xpose.msra.mxu0 0.0
    %641 = vmatprep.subr.mxu0 0.0
    %642 = vmatpush1.xpose.msra.mxu0 0.0
    %643 = vmatprep.mubr.f32.mxu0 0.0
    %v644 = vand.u32 %v95, 4294901760
    %645 = vmatmul.mubr.f32.gmra.mrb[0].mxu0 %v644
    %v646 = vpop.f32.mrb[0].mxu0
    %v647 = vadd.f32 %v528, %v646
    %v648 = vpop.f32.mrb[0].mxu0
    %649 = vdwg.mxu0
    %650 = vmatprep.subr.mxu0 0.0
    %v651 = vand.u32 %v63, 4294901760
    %652 = vmatpush1.xpose.msra.mxu0 %v651
    %653 = vmatprep.subr.mxu0 0.0
    %v654 = vand.u32 %v65, 4294901760
    %655 = vmatpush1.xpose.msra.mxu0 %v654
    %656 = vmatprep.subr.mxu0 0.0
    %v657 = vand.u32 %v67, 4294901760
    %658 = vmatpush1.xpose.msra.mxu0 %v657
    %659 = vmatprep.subr.mxu0 0.0
    %v660 = vand.u32 %v69, 4294901760
    %661 = vmatpush1.xpose.msra.mxu0 %v660
    %662 = vmatprep.subr.mxu0 0.0
    %v663 = vand.u32 %v71, 4294901760
    %664 = vmatpush1.xpose.msra.mxu0 %v663
    %665 = vmatprep.subr.mxu0 0.0
    %v666 = vand.u32 %v73, 4294901760
    %667 = vmatpush1.xpose.msra.mxu0 %v666
    %668 = vmatprep.subr.mxu0 0.0
    %v669 = vand.u32 %v75, 4294901760
    %670 = vmatpush1.xpose.msra.mxu0 %v669
    %671 = vmatprep.subr.mxu0 0.0
    %v672 = vand.u32 %v77, 4294901760
    %673 = vmatpush1.xpose.msra.mxu0 %v672
    %674 = vmatprep.subr.mxu0 0.0
    %v675 = vand.u32 %v79, 4294901760
    %676 = vmatpush1.xpose.msra.mxu0 %v675
    %677 = vmatprep.subr.mxu0 0.0
    %v678 = vand.u32 %v81, 4294901760
    %679 = vmatpush1.xpose.msra.mxu0 %v678
    %680 = vmatprep.subr.mxu0 0.0
    %v681 = vand.u32 %v83, 4294901760
    %682 = vmatpush1.xpose.msra.mxu0 %v681
    %683 = vmatprep.subr.mxu0 0.0
    %v684 = vand.u32 %v85, 4294901760
    %685 = vmatpush1.xpose.msra.mxu0 %v684
    %686 = vmatprep.subr.mxu0 0.0
    %v687 = vand.u32 %v87, 4294901760
    %688 = vmatpush1.xpose.msra.mxu0 %v687
    %689 = vmatprep.subr.mxu0 0.0
    %v690 = vand.u32 %v89, 4294901760
    %691 = vmatpush1.xpose.msra.mxu0 %v690
    %692 = vmatprep.subr.mxu0 0.0
    %v693 = vand.u32 %v91, 4294901760
    %694 = vmatpush1.xpose.msra.mxu0 %v693
    %695 = vmatprep.subr.mxu0 0.0
    %v696 = vand.u32 %v93, 4294901760
    %697 = vmatpush1.xpose.msra.mxu0 %v696
    %698 = vmatprep.subr.mxu0 0.0
    %699 = vmatpush1.xpose.msra.mxu0 0.0
    %700 = vmatprep.subr.mxu0 0.0
    %701 = vmatpush1.xpose.msra.mxu0 0.0
    %702 = vmatprep.subr.mxu0 0.0
    %703 = vmatpush1.xpose.msra.mxu0 0.0
    %704 = vmatprep.subr.mxu0 0.0
    %705 = vmatpush1.xpose.msra.mxu0 0.0
    %706 = vmatprep.subr.mxu0 0.0
    %707 = vmatpush1.xpose.msra.mxu0 0.0
    %708 = vmatprep.subr.mxu0 0.0
    %709 = vmatpush1.xpose.msra.mxu0 0.0
    %710 = vmatprep.subr.mxu0 0.0
    %711 = vmatpush1.xpose.msra.mxu0 0.0
    %712 = vmatprep.subr.mxu0 0.0
    %713 = vmatpush1.xpose.msra.mxu0 0.0
    %714 = vmatprep.subr.mxu0 0.0
    %715 = vmatpush1.xpose.msra.mxu0 0.0
    %716 = vmatprep.subr.mxu0 0.0
    %717 = vmatpush1.xpose.msra.mxu0 0.0
    %718 = vmatprep.subr.mxu0 0.0
    %719 = vmatpush1.xpose.msra.mxu0 0.0
    %720 = vmatprep.subr.mxu0 0.0
    %721 = vmatpush1.xpose.msra.mxu0 0.0
    %722 = vmatprep.subr.mxu0 0.0
    %723 = vmatpush1.xpose.msra.mxu0 0.0
    %724 = vmatprep.subr.mxu0 0.0
    %725 = vmatpush1.xpose.msra.mxu0 0.0
    %726 = vmatprep.subr.mxu0 0.0
    %727 = vmatpush1.xpose.msra.mxu0 0.0
    %728 = vmatprep.subr.mxu0 0.0
    %729 = vmatpush1.xpose.msra.mxu0 0.0
    %730 = vmatprep.mubr.f32.mxu0 0.0
    %v731 = vand.u32 %v95, 4294901760
    %732 = vmatmul.mubr.f32.gmra.mrb[0].mxu0 %v731
    %v733 = vpop.f32.mrb[0].mxu0
    %v734 = vadd.f32 %v647, %v733
    %v735 = vpop.f32.mrb[0].mxu0
    %736 = vdwg.mxu0
    %v737 = vadd.f32 %v94, %v734
    %738 = vst [vmem:[#allocation2] sm:$0xff] %v737
    // Predicated region
    $region26: #{tpu_custom_call.1} parent=1 // pred_check
      %p739 = pneg %p41
    $region27: #{tpu_custom_call.1} parent=1 // pred_check_branch
      %741 = sbr.rel (%p739) target = $region29
    $region28: #{tpu_custom_call.1} parent=1 // pred_region
      %v742 = vld [vmem:[#allocation2] sm:$0xff]
      %v743 = vld [vmem:[%s2] sm:$0x1]
      %v745 = vlaneseq
      %v746 = vshrl.u32 %v745, 7
      %v747 = vsub.s32 0, %v746
      %v748 = vrot.slane %v743, %v747
      %v750 = vadd.f32 %v742, %v748
      %751 = vst [vmem:[#allocation8] sm:$0xff] %v750
    $region29: #{tpu_custom_call.1} parent=1 // pred_fallthru
      _
    // Predicated region
    $region30: #{tpu_custom_call.1} parent=1 // pred_check
      _
    $region31: #{tpu_custom_call.1} parent=1 // pred_check_branch
      %753 = sbr.rel (0) target = $region33
    $region32: #{tpu_custom_call.1} parent=1 // pred_region
      %s755 = ssub.s32 128, 128
      %756 = vsyncadd [#allocation5], %s755
      %s758 = sshll.u32 [#allocation8], 4
      %s759 = int_to_ptr.vmem [resolvable:$true] %s758
      %761 = dma.vmem_to_hbm [thread:$0]  %s759, 128, %s3, [#allocation5]
    $region33: #{tpu_custom_call.1} parent=1 // pred_fallthru
      _
    // Predicated region
    $region34: #{tpu_custom_call.1} parent=1 // pred_check
      _
    $region35: #{tpu_custom_call.1} parent=1 // pred_check_branch
      %763 = sbr.rel (0) target = $region37
    $region36: #{tpu_custom_call.1} parent=1 // pred_region
      %764 = dma.done [#allocation5], 128
    $region37: #{tpu_custom_call.1} parent=1 // pred_fallthru
      _
    %765 = vsyncpa [#allocation4], 1
    %766 = vsyncpa [#allocation7], 1
    %767 = vsyncpa [#allocation5], 1

</llo_original>
